<compile_context>
chip_gen: v7x
topology: tpu7x:2x2x1
jax: 0.10.0
libtpu: 0.0.40
codegen_flags: <defaults>
</compile_context>

<pallas_src>
import jax
import jax.numpy as jnp
from jax.experimental import pallas as pl
from jax.experimental.pallas import tpu as pltpu


REPARAM_NOISE = 1e-4


def _softplus(x):
    # Numerically stable softplus, matching F.softplus semantics (f32).
    return jnp.maximum(x, 0.0) + jnp.log1p(jnp.exp(-jnp.abs(x)))


def _round_up(x, m):
    return ((x + m - 1) // m) * m


def make_kernel(X, H, S, OUT_W, compute_dtype):
    """Fused forward kernel. All row/lane offsets are static and 8-aligned.

    Weight-slab row layout (slab width = 2H):
      RA : (X, 2H)  [ w1 -> lanes [0,H) | w3_next_obs -> lanes [H,2H) ]
      R2 : (H, 2H)  [ w2 | 0 ]
      RB : (H, 2H)  [ wmu_t|wsg_t|0 -> lanes [0,H) | w3_hidden -> lanes [H,2H) ]
      R4 : (H, 2H)  [ w4 | 0 ]
      RR : (H, 2H)  [ wmu_r|wsg_r|0 | 0 ]
    """
    RA = 0
    R2 = X
    RB = X + H
    R4 = X + 2 * H
    RR = X + 3 * H
    PAD = OUT_W - 3 * H

    def kernel(xin_ref, w_ref, b_ref, out_ref):
        xin = xin_ref[...]                       # (TB, X) bf16
        b = b_ref[...]                           # (6, H)  f32

        def mm(a, rlo, nrows):
            return jnp.dot(a, w_ref[rlo:rlo + nrows, :],
                           preferred_element_type=jnp.float32)

        # Fused matmul 1: h1 pre-act + next_obs contribution to g1.
        pre1 = mm(xin, RA, X)                                    # (TB, 2H) f32
        h1 = jnp.maximum(pre1[:, :H] + b[0:1, :], 0.0)

        # trans_det layer 2.
        h2 = jnp.maximum(
            mm(h1.astype(compute_dtype), R2, H)[:, :H] + b[1:2, :], 0.0)
        h2b = h2.astype(compute_dtype)

        # Fused matmul 3: mu|sigma pre-act (lanes [0,H)) + hidden part of g1.
        pre2 = mm(h2b, RB, H)                                    # (TB, 2H) f32

        lane = jax.lax.broadcasted_iota(jnp.int32, (h2.shape[0], H), 1)

        # trans_stoc VariationalLinear: mu in lanes [0,S), softplus(sigma) in [S,H).
        t = pre2[:, :H] + b[2:3, :]
        t = jnp.where(lane < S, t, _softplus(t) + REPARAM_NOISE)

        # repr_model layer 1: hidden part + next_obs part + bias, one ReLU.
        g1 = jnp.maximum(pre2[:, H:2 * H] + pre1[:, H:2 * H] + b[3:4, :], 0.0)

        # repr_model layer 2.
        g2 = jnp.maximum(
            mm(g1.astype(compute_dtype), R4, H)[:, :H] + b[4:5, :], 0.0)

        # repr_model VariationalLinear.
        r = mm(g2.astype(compute_dtype), RR, H)[:, :H] + b[5:6, :]
        r = jnp.where(lane < S, r, _softplus(r) + REPARAM_NOISE)

        # Lane-dense output slab: [det(H) | t(H) | r(H) | zero-pad], one full store.
        blocks = [h2, t, r]
        if PAD:
            blocks.append(jnp.zeros((h2.shape[0], PAD), jnp.float32))
        out_ref[...] = jnp.concatenate(blocks, axis=1)

    return kernel


def init_params(key, obs_size, act_size, state_size, hidden_size):
    """Raw per-layer params (f32), mimicking nn.Linear U(-1/sqrt(fan_in), ...)."""
    def linear(k, fan_in, fan_out):
        kw, kb = jax.random.split(k)
        bound = 1.0 / jnp.sqrt(fan_in)
        w = jax.random.uniform(kw, (fan_in, fan_out), jnp.float32, -bound, bound)
        b = jax.random.uniform(kb, (1, fan_out), jnp.float32, -bound, bound)
        return w, b

    ks = jax.random.split(key, 8)
    p = {}
    p["w1"], p["b1"] = linear(ks[0], obs_size + act_size, hidden_size)
    p["w2"], p["b2"] = linear(ks[1], hidden_size, hidden_size)
    p["wmu_t"], p["bmu_t"] = linear(ks[2], hidden_size, state_size)
    p["wsg_t"], p["bsg_t"] = linear(ks[3], hidden_size, state_size)
    p["w3"], p["b3"] = linear(ks[4], hidden_size + obs_size, hidden_size)
    p["w4"], p["b4"] = linear(ks[5], hidden_size, hidden_size)
    p["wmu_r"], p["bmu_r"] = linear(ks[6], hidden_size, state_size)
    p["wsg_r"], p["bsg_r"] = linear(ks[7], hidden_size, state_size)
    return p


def pack_params(p, obs_size, act_size, state_size, hidden_size,
                compute_dtype=jnp.bfloat16):
    """Pack all weights into one bf16 slab (width 2H) + one (6, H) f32 bias slab."""
    O, A, S, H = obs_size, act_size, state_size, hidden_size
    assert H % 8 == 0, "hidden_size must be a multiple of 8 for this packing"
    assert 2 * S <= H, "2*state_size must fit within one hidden-wide block"

    X0 = O + A + O          # width of [obs | act | next_obs]
    X = _round_up(X0, 8)    # sublane-aligned activation width
    OUT_W = _round_up(3 * H, 128)   # lane-dense output width

    W2H = 2 * H

    # Fused block A: xin @ WA -> [h1 pre-act | next_obs part of g1 pre-act]
    WA = jnp.zeros((X, W2H), jnp.float32)
    WA = WA.at[:O + A, :H].set(p["w1"])
    WA = WA.at[O + A:O + A + O, H:2 * H].set(p["w3"][H:])

    W2 = jnp.zeros((H, W2H), jnp.float32).at[:, :H].set(p["w2"])

    # Fused block B: h2 @ WB -> [mu|sigma pre-act (padded to H) | hidden part of g1]
    WB = jnp.zeros((H, W2H), jnp.float32)
    WB = WB.at[:, :2 * S].set(jnp.concatenate([p["wmu_t"], p["wsg_t"]], axis=1))
    WB = WB.at[:, H:2 * H].set(p["w3"][:H])

    W4 = jnp.zeros((H, W2H), jnp.float32).at[:, :H].set(p["w4"])

    WR = jnp.zeros((H, W2H), jnp.float32)
    WR = WR.at[:, :2 * S].set(jnp.concatenate([p["wmu_r"], p["wsg_r"]], axis=1))

    wslab = jnp.concatenate([WA, W2, WB, W4, WR], axis=0).astype(compute_dtype)

    def padb(b):
        out = jnp.zeros((1, H), jnp.float32)
        return out.at[:, :b.shape[1]].set(b)

    bts = jnp.concatenate([p["bmu_t"], p["bsg_t"]], axis=1)
    brs = jnp.concatenate([p["bmu_r"], p["bsg_r"]], axis=1)
    bslab = jnp.concatenate(
        [padb(p["b1"]), padb(p["b2"]), padb(bts),
         padb(p["b3"]), padb(p["b4"]), padb(brs)], axis=0)   # (6, H) f32

    return {"wslab": wslab, "bslab": bslab,
            "dims": (O, A, S, H, X, OUT_W), "compute_dtype": compute_dtype}


def trans_repr_forward(obs, act, next_obs, packed, tb_max=512):
    O, A, S, H, X, OUT_W = packed["dims"]
    wslab, bslab = packed["wslab"], packed["bslab"]
    cdt = packed["compute_dtype"]

    B = obs.shape[0]
    Bp = _round_up(B, 16)                 # bf16 sublane packing
    TB = Bp if Bp <= tb_max else tb_max   # batch tile (multiple of 16)
    Bp = _round_up(Bp, TB)

    xin = jnp.concatenate([obs, act, next_obs], axis=1)       # (B, O+A+O)
    if xin.shape[1] < X:
        xin = jnp.pad(xin, ((0, 0), (0, X - xin.shape[1])))
    if Bp != B:
        xin = jnp.pad(xin, ((0, Bp - B), (0, 0)))
    xin = xin.astype(cdt)

    kernel = make_kernel(X, H, S, OUT_W, cdt)
    grid = (Bp // TB,)

    out = pl.pallas_call(
        kernel,
        out_shape=jax.ShapeDtypeStruct((Bp, OUT_W), jnp.float32),
        grid=grid,
        in_specs=[
            pl.BlockSpec((TB, X), lambda i: (i, 0)),          # batch-tiled activations
            pl.BlockSpec(wslab.shape, lambda i: (0, 0)),      # resident weight slab
            pl.BlockSpec(bslab.shape, lambda i: (0, 0)),      # resident bias slab
        ],
        out_specs=pl.BlockSpec((TB, OUT_W), lambda i: (i, 0)),
        compiler_params=pltpu.CompilerParams(
            dimension_semantics=("parallel",)),
    )(xin, wslab, bslab)

    out = out[:B]
    det = out[:, :H]
    tmu = out[:, H:H + S]
    tsg = out[:, H + S:H + 2 * S]
    rmu = out[:, 2 * H:2 * H + S]
    rsg = out[:, 2 * H + S:2 * H + 2 * S]

    # TODO(synk): torch.distributions.Independent(Normal(mu, sigma), 1) has no
    # Pallas equivalent; return the distribution parameters instead.
    return (tmu, tsg), (rmu, rsg), det


def ref_forward(obs, act, next_obs, p, compute_dtype=jnp.bfloat16):
    """Pure-JAX reference mirroring the kernel's bf16-operand / f32-accumulate math."""
    def mm(a, w):
        return jnp.dot(a.astype(compute_dtype), w.astype(compute_dtype),
                       preferred_element_type=jnp.float32)

    x = jnp.concatenate([obs, act], axis=1)
    h = jnp.maximum(mm(x, p["w1"]) + p["b1"], 0.0)
    h = jnp.maximum(mm(h, p["w2"]) + p["b2"], 0.0)
    tmu = mm(h, p["wmu_t"]) + p["bmu_t"]
    tsg = jax.nn.softplus(mm(h, p["wsg_t"]) + p["bsg_t"]) + REPARAM_NOISE
    y = jnp.concatenate([h, next_obs], axis=1)
    g = jnp.maximum(mm(y, p["w3"]) + p["b3"], 0.0)
    g = jnp.maximum(mm(g, p["w4"]) + p["b4"], 0.0)
    rmu = mm(g, p["wmu_r"]) + p["bmu_r"]
    rsg = jax.nn.softplus(mm(g, p["wsg_r"]) + p["bsg_r"]) + REPARAM_NOISE
    return tmu, tsg, rmu, rsg, h


if __name__ == "__main__":
    obs_size, act_size, state_size, hidden_size = 16, 8, 8, 32
    batch = 8

    key = jax.random.PRNGKey(0)
    kp, ko, ka, kn = jax.random.split(key, 4)

    raw = init_params(kp, obs_size, act_size, state_size, hidden_size)
    packed = pack_params(raw, obs_size, act_size, state_size, hidden_size)

    obs = jax.random.normal(ko, (batch, obs_size), jnp.float32)
    act = jax.random.normal(ka, (batch, act_size), jnp.float32)
    next_obs = jax.random.normal(kn, (batch, obs_size), jnp.float32)

    (tmu, tsg), (rmu, rsg), det = trans_repr_forward(obs, act, next_obs, packed)
    jax.block_until_ready((tmu, tsg, rmu, rsg, det))

    refs = ref_forward(obs, act, next_obs, raw)
    for got, want in zip((tmu, tsg, rmu, rsg, det), refs):
        assert got.shape == want.shape, "shape mismatch vs reference"
        assert jnp.allclose(got, want, atol=1e-3, rtol=1e-3), "mismatch vs reference"

    print("KERNEL_OK")
</pallas_src>

<mosaic_0001>
module attributes {stable_mosaic.version = 11 : i64} {
  func.func @kernel(%arg0: i32, %arg1: memref<16x40xbf16, #tpu.memory_space<vmem>>, %arg2: memref<168x64xbf16, #tpu.memory_space<vmem>>, %arg3: memref<6x32xf32, #tpu.memory_space<vmem>>, %arg4: memref<16x128xf32, #tpu.memory_space<vmem>>) attributes {dimension_semantics = [#tpu.dimension_semantics<parallel>], iteration_bounds = array<i64: 1>, scalar_prefetch = 0 : i64, scratch_operands = 0 : i64, tpu.core_type = #tpu.core_type<tc>, window_params = [{transform_indices = @transform_0, window_bounds = array<i64: 16, 40>}, {pipeline_mode = #tpu.pipeline_mode<synchronous>, transform_indices = @transform_1, window_bounds = array<i64: 168, 64>}, {pipeline_mode = #tpu.pipeline_mode<synchronous>, transform_indices = @transform_2, window_bounds = array<i64: 6, 32>}, {transform_indices = @transform_3, window_bounds = array<i64: 16, 128>}]} {
    %c0 = arith.constant 0 : index
    %c0_0 = arith.constant 0 : index
    %0 = vector.load %arg1[%c0, %c0_0] : memref<16x40xbf16, #tpu.memory_space<vmem>>, vector<16x40xbf16>
    %c0_1 = arith.constant 0 : index
    %c0_2 = arith.constant 0 : index
    %1 = vector.load %arg3[%c0_1, %c0_2] : memref<6x32xf32, #tpu.memory_space<vmem>>, vector<6x32xf32>
    %c0_3 = arith.constant 0 : index
    %c0_4 = arith.constant 0 : index
    %2 = vector.load %arg2[%c0_3, %c0_4] : memref<168x64xbf16, #tpu.memory_space<vmem>>, vector<40x64xbf16>
    %cst = arith.constant dense<0.000000e+00> : vector<16x64xf32>
    %3 = tpu.matmul %0, %2, %cst {dimension_numbers = #tpu.dot_dimension_numbers<[1], [0], [0], [1], [0, 0, 1, 1], [], []>} : vector<16x40xbf16>, vector<40x64xbf16>, vector<16x64xf32> -> vector<16x64xf32>
    %4 = vector.extract_strided_slice %3 {offsets = [0, 0], sizes = [16, 32], strides = [1, 1]} : vector<16x64xf32> to vector<16x32xf32>
    %5 = vector.extract_strided_slice %1 {offsets = [0, 0], sizes = [1, 32], strides = [1, 1]} : vector<6x32xf32> to vector<1x32xf32>
    %6 = vector.broadcast %5 : vector<1x32xf32> to vector<16x32xf32>
    %7 = arith.addf %4, %6 : vector<16x32xf32>
    %cst_5 = arith.constant 0.000000e+00 : f32
    %8 = vector.broadcast %cst_5 : f32 to vector<16x32xf32>
    %9 = arith.maximumf %7, %8 : vector<16x32xf32>
    %10 = arith.truncf %9 : vector<16x32xf32> to vector<16x32xbf16>
    %c40 = arith.constant 40 : index
    %c0_6 = arith.constant 0 : index
    %11 = vector.load %arg2[%c40, %c0_6] : memref<168x64xbf16, #tpu.memory_space<vmem>>, vector<32x64xbf16>
    %cst_7 = arith.constant dense<0.000000e+00> : vector<16x64xf32>
    %12 = tpu.matmul %10, %11, %cst_7 {dimension_numbers = #tpu.dot_dimension_numbers<[1], [0], [0], [1], [0, 0, 1, 1], [], []>} : vector<16x32xbf16>, vector<32x64xbf16>, vector<16x64xf32> -> vector<16x64xf32>
    %13 = vector.extract_strided_slice %12 {offsets = [0, 0], sizes = [16, 32], strides = [1, 1]} : vector<16x64xf32> to vector<16x32xf32>
    %14 = vector.extract_strided_slice %1 {offsets = [1, 0], sizes = [1, 32], strides = [1, 1]} : vector<6x32xf32> to vector<1x32xf32>
    %15 = vector.broadcast %14 : vector<1x32xf32> to vector<16x32xf32>
    %16 = arith.addf %13, %15 : vector<16x32xf32>
    %cst_8 = arith.constant 0.000000e+00 : f32
    %17 = vector.broadcast %cst_8 : f32 to vector<16x32xf32>
    %18 = arith.maximumf %16, %17 : vector<16x32xf32>
    %19 = arith.truncf %18 : vector<16x32xf32> to vector<16x32xbf16>
    %c72 = arith.constant 72 : index
    %c0_9 = arith.constant 0 : index
    %20 = vector.load %arg2[%c72, %c0_9] : memref<168x64xbf16, #tpu.memory_space<vmem>>, vector<32x64xbf16>
    %cst_10 = arith.constant dense<0.000000e+00> : vector<16x64xf32>
    %21 = tpu.matmul %19, %20, %cst_10 {dimension_numbers = #tpu.dot_dimension_numbers<[1], [0], [0], [1], [0, 0, 1, 1], [], []>} : vector<16x32xbf16>, vector<32x64xbf16>, vector<16x64xf32> -> vector<16x64xf32>
    %22 = tpu.iota {dimensions = array<i32: 1>} : vector<16x32xi32>
    %23 = vector.extract_strided_slice %21 {offsets = [0, 0], sizes = [16, 32], strides = [1, 1]} : vector<16x64xf32> to vector<16x32xf32>
    %24 = vector.extract_strided_slice %1 {offsets = [2, 0], sizes = [1, 32], strides = [1, 1]} : vector<6x32xf32> to vector<1x32xf32>
    %25 = vector.broadcast %24 : vector<1x32xf32> to vector<16x32xf32>
    %26 = arith.addf %23, %25 : vector<16x32xf32>
    %c8_i32 = arith.constant 8 : i32
    %27 = vector.broadcast %c8_i32 : i32 to vector<16x32xi32>
    %28 = arith.cmpi slt, %22, %27 : vector<16x32xi32>
    %cst_11 = arith.constant 0.000000e+00 : f32
    %29 = vector.broadcast %cst_11 : f32 to vector<16x32xf32>
    %30 = arith.maximumf %26, %29 : vector<16x32xf32>
    %31 = math.absf %26 : vector<16x32xf32>
    %cst_12 = arith.constant 0.000000e+00 : f32
    %32 = vector.broadcast %cst_12 : f32 to vector<16x32xf32>
    %33 = arith.subf %32, %31 : vector<16x32xf32>
    %34 = math.exp %33 : vector<16x32xf32>
    %35 = math.log1p %34 : vector<16x32xf32>
    %36 = arith.addf %30, %35 : vector<16x32xf32>
    %cst_13 = arith.constant 9.99999974E-5 : f32
    %37 = vector.broadcast %cst_13 : f32 to vector<16x32xf32>
    %38 = arith.addf %36, %37 : vector<16x32xf32>
    %39 = arith.select %28, %26, %38 : vector<16x32xi1>, vector<16x32xf32>
    %40 = vector.extract_strided_slice %21 {offsets = [0, 32], sizes = [16, 32], strides = [1, 1]} : vector<16x64xf32> to vector<16x32xf32>
    %41 = vector.extract_strided_slice %3 {offsets = [0, 32], sizes = [16, 32], strides = [1, 1]} : vector<16x64xf32> to vector<16x32xf32>
    %42 = arith.addf %40, %41 : vector<16x32xf32>
    %43 = vector.extract_strided_slice %1 {offsets = [3, 0], sizes = [1, 32], strides = [1, 1]} : vector<6x32xf32> to vector<1x32xf32>
    %44 = vector.broadcast %43 : vector<1x32xf32> to vector<16x32xf32>
    %45 = arith.addf %42, %44 : vector<16x32xf32>
    %cst_14 = arith.constant 0.000000e+00 : f32
    %46 = vector.broadcast %cst_14 : f32 to vector<16x32xf32>
    %47 = arith.maximumf %45, %46 : vector<16x32xf32>
    %48 = arith.truncf %47 : vector<16x32xf32> to vector<16x32xbf16>
    %c104 = arith.constant 104 : index
    %c0_15 = arith.constant 0 : index
    %49 = vector.load %arg2[%c104, %c0_15] : memref<168x64xbf16, #tpu.memory_space<vmem>>, vector<32x64xbf16>
    %cst_16 = arith.constant dense<0.000000e+00> : vector<16x64xf32>
    %50 = tpu.matmul %48, %49, %cst_16 {dimension_numbers = #tpu.dot_dimension_numbers<[1], [0], [0], [1], [0, 0, 1, 1], [], []>} : vector<16x32xbf16>, vector<32x64xbf16>, vector<16x64xf32> -> vector<16x64xf32>
    %51 = vector.extract_strided_slice %50 {offsets = [0, 0], sizes = [16, 32], strides = [1, 1]} : vector<16x64xf32> to vector<16x32xf32>
    %52 = vector.extract_strided_slice %1 {offsets = [4, 0], sizes = [1, 32], strides = [1, 1]} : vector<6x32xf32> to vector<1x32xf32>
    %53 = vector.broadcast %52 : vector<1x32xf32> to vector<16x32xf32>
    %54 = arith.addf %51, %53 : vector<16x32xf32>
    %cst_17 = arith.constant 0.000000e+00 : f32
    %55 = vector.broadcast %cst_17 : f32 to vector<16x32xf32>
    %56 = arith.maximumf %54, %55 : vector<16x32xf32>
    %57 = arith.truncf %56 : vector<16x32xf32> to vector<16x32xbf16>
    %c136 = arith.constant 136 : index
    %c0_18 = arith.constant 0 : index
    %58 = vector.load %arg2[%c136, %c0_18] : memref<168x64xbf16, #tpu.memory_space<vmem>>, vector<32x64xbf16>
    %cst_19 = arith.constant dense<0.000000e+00> : vector<16x64xf32>
    %59 = tpu.matmul %57, %58, %cst_19 {dimension_numbers = #tpu.dot_dimension_numbers<[1], [0], [0], [1], [0, 0, 1, 1], [], []>} : vector<16x32xbf16>, vector<32x64xbf16>, vector<16x64xf32> -> vector<16x64xf32>
    %60 = vector.extract_strided_slice %59 {offsets = [0, 0], sizes = [16, 32], strides = [1, 1]} : vector<16x64xf32> to vector<16x32xf32>
    %61 = vector.extract_strided_slice %1 {offsets = [5, 0], sizes = [1, 32], strides = [1, 1]} : vector<6x32xf32> to vector<1x32xf32>
    %62 = vector.broadcast %61 : vector<1x32xf32> to vector<16x32xf32>
    %63 = arith.addf %60, %62 : vector<16x32xf32>
    %c8_i32_20 = arith.constant 8 : i32
    %64 = vector.broadcast %c8_i32_20 : i32 to vector<16x32xi32>
    %65 = arith.cmpi slt, %22, %64 : vector<16x32xi32>
    %cst_21 = arith.constant 0.000000e+00 : f32
    %66 = vector.broadcast %cst_21 : f32 to vector<16x32xf32>
    %67 = arith.maximumf %63, %66 : vector<16x32xf32>
    %68 = math.absf %63 : vector<16x32xf32>
    %cst_22 = arith.constant 0.000000e+00 : f32
    %69 = vector.broadcast %cst_22 : f32 to vector<16x32xf32>
    %70 = arith.subf %69, %68 : vector<16x32xf32>
    %71 = math.exp %70 : vector<16x32xf32>
    %72 = math.log1p %71 : vector<16x32xf32>
    %73 = arith.addf %67, %72 : vector<16x32xf32>
    %cst_23 = arith.constant 9.99999974E-5 : f32
    %74 = vector.broadcast %cst_23 : f32 to vector<16x32xf32>
    %75 = arith.addf %73, %74 : vector<16x32xf32>
    %76 = arith.select %65, %63, %75 : vector<16x32xi1>, vector<16x32xf32>
    %cst_24 = arith.constant 0.000000e+00 : f32
    %77 = vector.broadcast %cst_24 : f32 to vector<16x32xf32>
    %78 = tpu.concatenate %18, %39, %76, %77 in 1 : vector<16x32xf32>, vector<16x32xf32>, vector<16x32xf32>, vector<16x32xf32> -> vector<16x128xf32>
    %c0_25 = arith.constant 0 : index
    %c0_26 = arith.constant 0 : index
    %79 = vector.load %arg4[%c0_25, %c0_26] : memref<16x128xf32, #tpu.memory_space<vmem>>, vector<16x128xf32>
    tpu.vector_store %arg4[%c0_25, %c0_26], %78 {strides = array<i32>} : memref<16x128xf32, #tpu.memory_space<vmem>>, vector<16x128xf32>,
    return
  }
  func.func @transform_0(%arg0: i32) -> (i32, i32) {
    %c0_i32 = arith.constant 0 : i32
    %c0_i32_0 = arith.constant 0 : i32
    return %arg0, %c0_i32 : i32, i32
  }
  func.func @transform_1(%arg0: i32) -> (i32, i32) {
    %c0_i32 = arith.constant 0 : i32
    %c0_i32_0 = arith.constant 0 : i32
    %c0_i32_1 = arith.constant 0 : i32
    return %c0_i32, %c0_i32_0 : i32, i32
  }
  func.func @transform_2(%arg0: i32) -> (i32, i32) {
    %c0_i32 = arith.constant 0 : i32
    %c0_i32_0 = arith.constant 0 : i32
    %c0_i32_1 = arith.constant 0 : i32
    return %c0_i32, %c0_i32_0 : i32, i32
  }
  func.func @transform_3(%arg0: i32) -> (i32, i32) {
    %c0_i32 = arith.constant 0 : i32
    %c0_i32_0 = arith.constant 0 : i32
    return %arg0, %c0_i32 : i32, i32
  }
}

</mosaic_0001>

<llo_original>
// kernel: tpu_custom_call.1
$region0: #{tpu_custom_call.1}
  #allocation0 [shape = 'u32[]', space=smem, size = 0x4, offset = 0x4, fixed_abs, tag = 'smem constant byte address 0x4 - core index']
  #allocation1 [shape = 'u32[144,128]{1,0:T(1,128)}', space=vmem, size = 0x12000, scoped, tag = 'internal scratch']
  %s0 = inlined_call_operand.vmem [shape: bf16[16,40], index: 0, kind: input, shape index: {}]
  %s1 = inlined_call_operand.vmem [shape: bf16[168,64], index: 1, kind: input, shape index: {}]
  %s2 = inlined_call_operand.vmem [shape: f32[6,32], index: 2, kind: input, shape index: {}]
  %s3 = inlined_call_operand.hbm [shape: f32[16,128], index: 3, kind: output, shape index: {}]
  %s4 = sld [smem:[#allocation0]]
  $region22: #{tpu_custom_call.1} parent=0
    _
  %s6 = ssub.s32 1, %s4
  %s7 = scalar_select 0, %s6, %s4
  $region1: #{tpu_custom_call.1} parent=0
    #allocation2 [shape = 'u8[8192]{0}', space=vmem, size = 0x2000, scoped, tag = 'output window, operand 0, single buffered']
    #allocation3 [shape = 's32[1]{0}', space=sflag, size = 0x4, scoped, tag = 'scoped memory for tpu_custom_call.1']
    %8 = vsyncpa [#allocation3], 0
    // Predicated region
    $region2: #{tpu_custom_call.1} parent=1 // pred_check
      _
    $region3: #{tpu_custom_call.1} parent=1 // pred_check_branch
      %10 = sbr.rel (0) target = $region5
    $region4: #{tpu_custom_call.1} parent=1 // pred_region
      _
    $region5: #{tpu_custom_call.1} parent=1 // pred_fallthru
      _
    // Predicated region
    $region6: #{tpu_custom_call.1} parent=1 // pred_check
      _
    $region7: #{tpu_custom_call.1} parent=1 // pred_check_branch
      %12 = sbr.rel (0) target = $region9
    $region8: #{tpu_custom_call.1} parent=1 // pred_region
      _
    $region9: #{tpu_custom_call.1} parent=1 // pred_fallthru
      _
    // Predicated region
    $region10: #{tpu_custom_call.1} parent=1 // pred_check
      _
    $region11: #{tpu_custom_call.1} parent=1 // pred_check_branch
      %14 = sbr.rel (0) target = $region13
    $region12: #{tpu_custom_call.1} parent=1 // pred_region
      _
    $region13: #{tpu_custom_call.1} parent=1 // pred_fallthru
      _
    %v16 = vld [vmem:[%s0] sm:$0xf]
    %v17 = vld [vmem:[%s0 + $0x4] sm:$0xf]
    %v18 = vld [vmem:[%s2] sm:$0x3f]
    %v19 = vld [vmem:[%s1] sm:$0xf]
    %v20 = vld [vmem:[%s1 + $0x4] sm:$0xf]
    %v21 = vld [vmem:[%s1 + $0x8] sm:$0xf]
    %v22 = vld [vmem:[%s1 + $0xc] sm:$0xf]
    %v23 = vld [vmem:[%s1 + $0x10] sm:$0xf]
    %v26 = vunpack.c.l.b16 %v16
    %v27 = vunpack.c.l.b16 %v17
    %v28 = vpack.c.b16 %v27, %v26
    %v34 = vunpack.c.l.b16 %v19
    %v35 = vunpack.c.l.b16 %v20
    %v36 = vunpack.c.l.b16 %v21
    %v37 = vunpack.c.l.b16 %v22
    %v38 = vunpack.c.l.b16 %v23
    %v39 = vpack.c.b16 %v35, %v34
    %v40 = vpack.c.b16 %v37, %v36
    %v41 = vpack.c.b16 %v38, %v38
    %vm44 = vcmask 326656
    %v46 = vsel %vm44, %v28, 0
    %vm48 = vcmask 1043456
    %v50 = vsel %vm48, %v41, 0
    %52 = vmatprep.subr.bf16.mxu0 0
    %53 = vmatpush1.bf16.msra.mxu0 %v39
    %54 = vmatprep.subr.bf16.mxu0 0
    %55 = vmatpush1.bf16.msra.mxu0 %v40
    %56 = vmatprep.subr.bf16.mxu0 0
    %57 = vmatpush1.bf16.msra.mxu0 %v50
    %58 = vmatprep.subr.bf16.mxu0 0
    %59 = vmatpush1.bf16.msra.mxu0 0
    %60 = vmatprep.subr.bf16.mxu0 0
    %61 = vmatpush1.bf16.msra.mxu0 0
    %62 = vmatprep.subr.bf16.mxu0 0
    %63 = vmatpush1.bf16.msra.mxu0 0
    %64 = vmatprep.subr.bf16.mxu0 0
    %65 = vmatpush1.bf16.msra.mxu0 0
    %66 = vmatprep.subr.bf16.mxu0 0
    %67 = vmatpush1.bf16.msra.mxu0 0
    %68 = vmatprep.subr.bf16.mxu0 0
    %69 = vmatpush1.bf16.msra.mxu0 0
    %70 = vmatprep.subr.bf16.mxu0 0
    %71 = vmatpush1.bf16.msra.mxu0 0
    %72 = vmatprep.subr.bf16.mxu0 0
    %73 = vmatpush1.bf16.msra.mxu0 0
    %74 = vmatprep.subr.bf16.mxu0 0
    %75 = vmatpush1.bf16.msra.mxu0 0
    %76 = vmatprep.subr.bf16.mxu0 0
    %77 = vmatpush1.bf16.msra.mxu0 0
    %78 = vmatprep.subr.bf16.mxu0 0
    %79 = vmatpush1.bf16.msra.mxu0 0
    %80 = vmatprep.subr.bf16.mxu0 0
    %81 = vmatpush1.bf16.msra.mxu0 0
    %82 = vmatprep.subr.bf16.mxu0 0
    %83 = vmatpush1.bf16.msra.mxu0 0
    %84 = vmatprep.mubr.bf16.mxu0 0
    %85 = vmatmul.mubr.bf16.gmra.mrb[0].mxu0 %v46
    %v86 = vpop.f32.mrb[0].mxu0
    %v87 = vadd.f32 0.0, %v86
    %v88 = vpop.f32.mrb[0].mxu0
    %v89 = vpop.f32.mrb[0].mxu0
    %v90 = vadd.f32 0.0, %v89
    %v91 = vpop.f32.mrb[0].mxu0
    %92 = vdwg.mxu0
    %v93 = vlaneseq
    %v94 = vshrl.u32 %v93, 7
    %v95 = vsub.s32 0, %v94
    %v96 = vrot.slane %v18, %v95
    %v97 = vadd.f32 %v87, %v96
    %v98 = vadd.f32 %v90, %v96
    %v99 = vmax.f32 %v97, 0.0
    %v100 = vmax.f32 %v98, 0.0
    %v101 = vpack.c.bf16 %v100, %v99
    %v102 = vld [vmem:[%s1 + $0x14] sm:$0xf]
    %v103 = vld [vmem:[%s1 + $0x18] sm:$0xf]
    %v104 = vld [vmem:[%s1 + $0x1c] sm:$0xf]
    %v105 = vld [vmem:[%s1 + $0x20] sm:$0xf]
    %v110 = vunpack.c.l.b16 %v102
    %v111 = vunpack.c.l.b16 %v103
    %v112 = vunpack.c.l.b16 %v104
    %v113 = vunpack.c.l.b16 %v105
    %v114 = vpack.c.b16 %v111, %v110
    %v115 = vpack.c.b16 %v113, %v112
    %vm118 = vcmask 261120
    %v120 = vsel %vm118, %v101, 0
    %122 = vmatprep.subr.bf16.mxu0 0
    %123 = vmatpush1.bf16.msra.mxu0 %v114
    %124 = vmatprep.subr.bf16.mxu0 0
    %125 = vmatpush1.bf16.msra.mxu0 %v115
    %126 = vmatprep.subr.bf16.mxu0 0
    %127 = vmatpush1.bf16.msra.mxu0 0
    %128 = vmatprep.subr.bf16.mxu0 0
    %129 = vmatpush1.bf16.msra.mxu0 0
    %130 = vmatprep.subr.bf16.mxu0 0
    %131 = vmatpush1.bf16.msra.mxu0 0
    %132 = vmatprep.subr.bf16.mxu0 0
    %133 = vmatpush1.bf16.msra.mxu0 0
    %134 = vmatprep.subr.bf16.mxu0 0
    %135 = vmatpush1.bf16.msra.mxu0 0
    %136 = vmatprep.subr.bf16.mxu0 0
    %137 = vmatpush1.bf16.msra.mxu0 0
    %138 = vmatprep.subr.bf16.mxu0 0
    %139 = vmatpush1.bf16.msra.mxu0 0
    %140 = vmatprep.subr.bf16.mxu0 0
    %141 = vmatpush1.bf16.msra.mxu0 0
    %142 = vmatprep.subr.bf16.mxu0 0
    %143 = vmatpush1.bf16.msra.mxu0 0
    %144 = vmatprep.subr.bf16.mxu0 0
    %145 = vmatpush1.bf16.msra.mxu0 0
    %146 = vmatprep.subr.bf16.mxu0 0
    %147 = vmatpush1.bf16.msra.mxu0 0
    %148 = vmatprep.subr.bf16.mxu0 0
    %149 = vmatpush1.bf16.msra.mxu0 0
    %150 = vmatprep.subr.bf16.mxu0 0
    %151 = vmatpush1.bf16.msra.mxu0 0
    %152 = vmatprep.subr.bf16.mxu0 0
    %153 = vmatpush1.bf16.msra.mxu0 0
    %154 = vmatprep.mubr.bf16.mxu0 0
    %155 = vmatmul.mubr.bf16.gmra.mrb[0].mxu0 %v120
    %v156 = vpop.f32.mrb[0].mxu0
    %v157 = vadd.f32 0.0, %v156
    %v158 = vpop.f32.mrb[0].mxu0
    %v159 = vpop.f32.mrb[0].mxu0
    %v160 = vadd.f32 0.0, %v159
    %v161 = vpop.f32.mrb[0].mxu0
    %162 = vdwg.mxu0
    %v163 = vlaneseq
    %v164 = vshrl.u32 %v163, 7
    %v165 = vsub.s32 1, %v164
    %v166 = vrot.slane %v18, %v165
    %v167 = vadd.f32 %v157, %v166
    %v168 = vadd.f32 %v160, %v166
    %v169 = vmax.f32 %v167, 0.0
    %v170 = vmax.f32 %v168, 0.0
    %v171 = vpack.c.bf16 %v170, %v169
    %v172 = vld [vmem:[%s1 + $0x24] sm:$0xf]
    %v173 = vld [vmem:[%s1 + $0x28] sm:$0xf]
    %v174 = vld [vmem:[%s1 + $0x2c] sm:$0xf]
    %v175 = vld [vmem:[%s1 + $0x30] sm:$0xf]
    %v180 = vunpack.c.l.b16 %v172
    %v181 = vunpack.c.l.b16 %v173
    %v182 = vunpack.c.l.b16 %v174
    %v183 = vunpack.c.l.b16 %v175
    %v184 = vpack.c.b16 %v181, %v180
    %v185 = vpack.c.b16 %v183, %v182
    %v189 = vsel %vm118, %v171, 0
    %191 = vmatprep.subr.bf16.mxu0 0
    %192 = vmatpush1.bf16.msra.mxu0 %v184
    %193 = vmatprep.subr.bf16.mxu0 0
    %194 = vmatpush1.bf16.msra.mxu0 %v185
    %195 = vmatprep.subr.bf16.mxu0 0
    %196 = vmatpush1.bf16.msra.mxu0 0
    %197 = vmatprep.subr.bf16.mxu0 0
    %198 = vmatpush1.bf16.msra.mxu0 0
    %199 = vmatprep.subr.bf16.mxu0 0
    %200 = vmatpush1.bf16.msra.mxu0 0
    %201 = vmatprep.subr.bf16.mxu0 0
    %202 = vmatpush1.bf16.msra.mxu0 0
    %203 = vmatprep.subr.bf16.mxu0 0
    %204 = vmatpush1.bf16.msra.mxu0 0
    %205 = vmatprep.subr.bf16.mxu0 0
    %206 = vmatpush1.bf16.msra.mxu0 0
    %207 = vmatprep.subr.bf16.mxu0 0
    %208 = vmatpush1.bf16.msra.mxu0 0
    %209 = vmatprep.subr.bf16.mxu0 0
    %210 = vmatpush1.bf16.msra.mxu0 0
    %211 = vmatprep.subr.bf16.mxu0 0
    %212 = vmatpush1.bf16.msra.mxu0 0
    %213 = vmatprep.subr.bf16.mxu0 0
    %214 = vmatpush1.bf16.msra.mxu0 0
    %215 = vmatprep.subr.bf16.mxu0 0
    %216 = vmatpush1.bf16.msra.mxu0 0
    %217 = vmatprep.subr.bf16.mxu0 0
    %218 = vmatpush1.bf16.msra.mxu0 0
    %219 = vmatprep.subr.bf16.mxu0 0
    %220 = vmatpush1.bf16.msra.mxu0 0
    %221 = vmatprep.subr.bf16.mxu0 0
    %222 = vmatpush1.bf16.msra.mxu0 0
    %223 = vmatprep.mubr.bf16.mxu0 0
    %224 = vmatmul.mubr.bf16.gmra.mrb[0].mxu0 %v189
    %v225 = vpop.f32.mrb[0].mxu0
    %v226 = vadd.f32 0.0, %v225
    %v227 = vpop.f32.mrb[0].mxu0
    %v228 = vpop.f32.mrb[0].mxu0
    %v229 = vadd.f32 0.0, %v228
    %v230 = vpop.f32.mrb[0].mxu0
    %231 = vdwg.mxu0
    %v232 = vlaneseq
    %v233 = vand.u32 %v232, 127
    %v234 = vlaneseq
    %v235 = vshrl.u32 %v234, 7
    %v236 = vsub.s32 2, %v235
    %v237 = vrot.slane %v18, %v236
    %v238 = vadd.f32 %v226, %v237
    %v239 = vadd.f32 %v229, %v237
    %vm240 = vcmp.lt.s32.totalorder %v233, 8
    %v241 = vmax.f32 %v238, 0.0
    %v242 = vmax.f32 %v239, 0.0
    %v243 = vand.u32 2147483647, %v238
    %v244 = vand.u32 2147483647, %v239
    %v245 = vsub.f32 0.0, %v243
    %v246 = vsub.f32 0.0, %v244
    %v247 = vmul.f32 %v245, 1.442695
    %v248 = vpow.pop %v247
    %v249 = vmul.f32 %v246, 1.442695
    %v250 = vpow.pop %v249
    %v251 = vadd.f32 %v248, 1.0
    %v252 = vlog2.pop %v251
    %v253 = vmul.f32 %v252, 0.6931472
    %v254 = vmul.f32 -0.5, %v248
    %v255 = vadd.f32 %v254, 1.0
    %v256 = vmul.f32 %v255, %v248
    %v257 = vand.u32 2147483647, %v248
    %vm258 = vcmp.lt.f32.partialorder %v257, 0.0004427343
    %v259 = vsel %vm258, %v256, %v253
    %v260 = vadd.f32 %v250, 1.0
    %v261 = vlog2.pop %v260
    %v262 = vmul.f32 %v261, 0.6931472
    %v263 = vmul.f32 -0.5, %v250
    %v264 = vadd.f32 %v263, 1.0
    %v265 = vmul.f32 %v264, %v250
    %v266 = vand.u32 2147483647, %v250
    %vm267 = vcmp.lt.f32.partialorder %v266, 0.0004427343
    %v268 = vsel %vm267, %v265, %v262
    %v269 = vadd.f32 %v241, %v259
    %v270 = vadd.f32 %v242, %v268
    %v271 = vadd.f32 %v269, 0.0001
    %v272 = vadd.f32 %v270, 0.0001
    %v273 = vsel %vm240, %v238, %v271
    %v274 = vsel %vm240, %v239, %v272
    %v275 = vadd.f32 %v226, %v87
    %v276 = vadd.f32 %v229, %v90
    %v277 = vlaneseq
    %v278 = vshrl.u32 %v277, 7
    %v279 = vsub.s32 3, %v278
    %v280 = vrot.slane %v18, %v279
    %282 = vrot.lane.b32.xlu0 %v280, 32
    %v283 = vpop.permute.xlu0 %282
    %v285 = vadd.f32 %v275, %v283
    %v286 = vadd.f32 %v276, %v283
    %v287 = vmax.f32 %v285, 0.0
    %v288 = vmax.f32 %v286, 0.0
    %v289 = vpack.c.bf16 %v288, %v287
    %v290 = vld [vmem:[%s1 + $0x34] sm:$0xf]
    %v291 = vld [vmem:[%s1 + $0x38] sm:$0xf]
    %v292 = vld [vmem:[%s1 + $0x3c] sm:$0xf]
    %v293 = vld [vmem:[%s1 + $0x40] sm:$0xf]
    %295 = vrot.lane.b32.xlu0 %v289, 96
    %v296 = vpop.permute.xlu0 %295
    %v301 = vunpack.c.l.b16 %v290
    %v302 = vunpack.c.l.b16 %v291
    %v303 = vunpack.c.l.b16 %v292
    %v304 = vunpack.c.l.b16 %v293
    %v305 = vpack.c.b16 %v302, %v301
    %v306 = vpack.c.b16 %v304, %v303
    %v310 = vsel %vm118, %v296, 0
    %312 = vmatprep.subr.bf16.mxu0 0
    %313 = vmatpush1.bf16.msra.mxu0 %v305
    %314 = vmatprep.subr.bf16.mxu0 0
    %315 = vmatpush1.bf16.msra.mxu0 %v306
    %316 = vmatprep.subr.bf16.mxu0 0
    %317 = vmatpush1.bf16.msra.mxu0 0
    %318 = vmatprep.subr.bf16.mxu0 0
    %319 = vmatpush1.bf16.msra.mxu0 0
    %320 = vmatprep.subr.bf16.mxu0 0
    %321 = vmatpush1.bf16.msra.mxu0 0
    %322 = vmatprep.subr.bf16.mxu0 0
    %323 = vmatpush1.bf16.msra.mxu0 0
    %324 = vmatprep.subr.bf16.mxu0 0
    %325 = vmatpush1.bf16.msra.mxu0 0
    %326 = vmatprep.subr.bf16.mxu0 0
    %327 = vmatpush1.bf16.msra.mxu0 0
    %328 = vmatprep.subr.bf16.mxu0 0
    %329 = vmatpush1.bf16.msra.mxu0 0
    %330 = vmatprep.subr.bf16.mxu0 0
    %331 = vmatpush1.bf16.msra.mxu0 0
    %332 = vmatprep.subr.bf16.mxu0 0
    %333 = vmatpush1.bf16.msra.mxu0 0
    %334 = vmatprep.subr.bf16.mxu0 0
    %335 = vmatpush1.bf16.msra.mxu0 0
    %336 = vmatprep.subr.bf16.mxu0 0
    %337 = vmatpush1.bf16.msra.mxu0 0
    %338 = vmatprep.subr.bf16.mxu0 0
    %339 = vmatpush1.bf16.msra.mxu0 0
    %340 = vmatprep.subr.bf16.mxu0 0
    %341 = vmatpush1.bf16.msra.mxu0 0
    %342 = vmatprep.subr.bf16.mxu0 0
    %343 = vmatpush1.bf16.msra.mxu0 0
    %344 = vmatprep.mubr.bf16.mxu0 0
    %345 = vmatmul.mubr.bf16.gmra.mrb[0].mxu0 %v310
    %v346 = vpop.f32.mrb[0].mxu0
    %v347 = vadd.f32 0.0, %v346
    %v348 = vpop.f32.mrb[0].mxu0
    %v349 = vpop.f32.mrb[0].mxu0
    %v350 = vadd.f32 0.0, %v349
    %v351 = vpop.f32.mrb[0].mxu0
    %352 = vdwg.mxu0
    %v353 = vlaneseq
    %v354 = vshrl.u32 %v353, 7
    %v355 = vsub.s32 4, %v354
    %v356 = vrot.slane %v18, %v355
    %v357 = vadd.f32 %v347, %v356
    %v358 = vadd.f32 %v350, %v356
    %v359 = vmax.f32 %v357, 0.0
    %v360 = vmax.f32 %v358, 0.0
    %v361 = vpack.c.bf16 %v360, %v359
    %v362 = vld [vmem:[%s1 + $0x44] sm:$0xf]
    %v363 = vld [vmem:[%s1 + $0x48] sm:$0xf]
    %v364 = vld [vmem:[%s1 + $0x4c] sm:$0xf]
    %v365 = vld [vmem:[%s1 + $0x50] sm:$0xf]
    %v370 = vunpack.c.l.b16 %v362
    %v371 = vunpack.c.l.b16 %v363
    %v372 = vunpack.c.l.b16 %v364
    %v373 = vunpack.c.l.b16 %v365
    %v374 = vpack.c.b16 %v371, %v370
    %v375 = vpack.c.b16 %v373, %v372
    %v379 = vsel %vm118, %v361, 0
    %381 = vmatprep.subr.bf16.mxu0 0
    %382 = vmatpush1.bf16.msra.mxu0 %v374
    %383 = vmatprep.subr.bf16.mxu0 0
    %384 = vmatpush1.bf16.msra.mxu0 %v375
    %385 = vmatprep.subr.bf16.mxu0 0
    %386 = vmatpush1.bf16.msra.mxu0 0
    %387 = vmatprep.subr.bf16.mxu0 0
    %388 = vmatpush1.bf16.msra.mxu0 0
    %389 = vmatprep.subr.bf16.mxu0 0
    %390 = vmatpush1.bf16.msra.mxu0 0
    %391 = vmatprep.subr.bf16.mxu0 0
    %392 = vmatpush1.bf16.msra.mxu0 0
    %393 = vmatprep.subr.bf16.mxu0 0
    %394 = vmatpush1.bf16.msra.mxu0 0
    %395 = vmatprep.subr.bf16.mxu0 0
    %396 = vmatpush1.bf16.msra.mxu0 0
    %397 = vmatprep.subr.bf16.mxu0 0
    %398 = vmatpush1.bf16.msra.mxu0 0
    %399 = vmatprep.subr.bf16.mxu0 0
    %400 = vmatpush1.bf16.msra.mxu0 0
    %401 = vmatprep.subr.bf16.mxu0 0
    %402 = vmatpush1.bf16.msra.mxu0 0
    %403 = vmatprep.subr.bf16.mxu0 0
    %404 = vmatpush1.bf16.msra.mxu0 0
    %405 = vmatprep.subr.bf16.mxu0 0
    %406 = vmatpush1.bf16.msra.mxu0 0
    %407 = vmatprep.subr.bf16.mxu0 0
    %408 = vmatpush1.bf16.msra.mxu0 0
    %409 = vmatprep.subr.bf16.mxu0 0
    %410 = vmatpush1.bf16.msra.mxu0 0
    %411 = vmatprep.subr.bf16.mxu0 0
    %412 = vmatpush1.bf16.msra.mxu0 0
    %413 = vmatprep.mubr.bf16.mxu0 0
    %414 = vmatmul.mubr.bf16.gmra.mrb[0].mxu0 %v379
    %v415 = vpop.f32.mrb[0].mxu0
    %v416 = vadd.f32 0.0, %v415
    %v417 = vpop.f32.mrb[0].mxu0
    %v418 = vpop.f32.mrb[0].mxu0
    %v419 = vadd.f32 0.0, %v418
    %v420 = vpop.f32.mrb[0].mxu0
    %421 = vdwg.mxu0
    %v422 = vlaneseq
    %v423 = vshrl.u32 %v422, 7
    %v424 = vsub.s32 5, %v423
    %v425 = vrot.slane %v18, %v424
    %v426 = vadd.f32 %v416, %v425
    %v427 = vadd.f32 %v419, %v425
    %v428 = vmax.f32 %v426, 0.0
    %v429 = vmax.f32 %v427, 0.0
    %v430 = vand.u32 2147483647, %v426
    %v431 = vand.u32 2147483647, %v427
    %v432 = vsub.f32 0.0, %v430
    %v433 = vsub.f32 0.0, %v431
    %v434 = vmul.f32 %v432, 1.442695
    %v435 = vpow.pop %v434
    %v436 = vmul.f32 %v433, 1.442695
    %v437 = vpow.pop %v436
    %v438 = vadd.f32 %v435, 1.0
    %v439 = vlog2.pop %v438
    %v440 = vmul.f32 %v439, 0.6931472
    %v441 = vmul.f32 -0.5, %v435
    %v442 = vadd.f32 %v441, 1.0
    %v443 = vmul.f32 %v442, %v435
    %v444 = vand.u32 2147483647, %v435
    %vm445 = vcmp.lt.f32.partialorder %v444, 0.0004427343
    %v446 = vsel %vm445, %v443, %v440
    %v447 = vadd.f32 %v437, 1.0
    %v448 = vlog2.pop %v447
    %v449 = vmul.f32 %v448, 0.6931472
    %v450 = vmul.f32 -0.5, %v437
    %v451 = vadd.f32 %v450, 1.0
    %v452 = vmul.f32 %v451, %v437
    %v453 = vand.u32 2147483647, %v437
    %vm454 = vcmp.lt.f32.partialorder %v453, 0.0004427343
    %v455 = vsel %vm454, %v452, %v449
    %v456 = vadd.f32 %v428, %v446
    %v457 = vadd.f32 %v429, %v455
    %v458 = vadd.f32 %v456, 0.0001
    %v459 = vadd.f32 %v457, 0.0001
    %v460 = vsel %vm240, %v426, %v458
    %v461 = vsel %vm240, %v427, %v459
    %464 = vrot.lane.b32.xlu0 %v273, 32
    %v465 = vpop.permute.xlu0 %464
    %466 = vrot.lane.b32.xlu0 %v274, 32
    %v467 = vpop.permute.xlu0 %466
    %472 = vrot.lane.b32.xlu0 %v460, 64
    %v473 = vpop.permute.xlu0 %472
    %474 = vrot.lane.b32.xlu0 %v461, 64
    %v475 = vpop.permute.xlu0 %474
    %v478 = vsel %vm118, %v169, %v465
    %v479 = vsel %vm118, %v170, %v467
    %vm480 = vcmask 523264
    %v481 = vsel %vm480, %v478, %v473
    %v482 = vsel %vm480, %v479, %v475
    %vm483 = vcmask 785408
    %v484 = vsel %vm483, %v481, 0.0
    %v485 = vsel %vm483, %v482, 0.0
    %486 = vst [vmem:[#allocation2] sm:$0xff] %v484
    %487 = vst [vmem:[#allocation2 + $0x8] sm:$0xff] %v485
    // Predicated region
    $region14: #{tpu_custom_call.1} parent=1 // pred_check
      _
    $region15: #{tpu_custom_call.1} parent=1 // pred_check_branch
      %489 = sbr.rel (0) target = $region17
    $region16: #{tpu_custom_call.1} parent=1 // pred_region
      %s491 = ssub.s32 256, 256
      %492 = vsyncadd [#allocation3], %s491
      %s493 = sshll.u32 [#allocation2], 4
      %s494 = int_to_ptr.vmem [resolvable:$true] %s493
      %499 = dma.vmem_to_hbm [thread:$0]  %s494, 256, %s3, [#allocation3], 128, 128, 8
    $region17: #{tpu_custom_call.1} parent=1 // pred_fallthru
      _
    // Predicated region
    $region18: #{tpu_custom_call.1} parent=1 // pred_check
      _
    $region19: #{tpu_custom_call.1} parent=1 // pred_check_branch
      %501 = sbr.rel (0) target = $region21
    $region20: #{tpu_custom_call.1} parent=1 // pred_region
      %502 = dma.done [#allocation3], 256
    $region21: #{tpu_custom_call.1} parent=1 // pred_fallthru
      _
    %503 = vsyncpa [#allocation3], 1

</llo_original>
